<compile_context>
chip_gen: v7x
topology: tpu7x:2x2x1
jax: 0.10.0
libtpu: 0.0.40
codegen_flags: <defaults>
</compile_context>

<pallas_src>
import functools

import jax
import jax.numpy as jnp
import numpy as np
from jax.experimental import pallas as pl
from jax.experimental.pallas import tpu as pltpu

LANES = 128


def _round_up(x, m):
    return ((x + m - 1) // m) * m


def _pad2(a, rows, cols):
    return jnp.pad(a, ((0, rows - a.shape[0]), (0, cols - a.shape[1])))


def _vmem_capacity_bytes():
    try:
        info = pltpu.get_tpu_info()
        cap = getattr(info, "vmem_capacity_bytes", None)
        if cap:
            return int(cap)
    except Exception:
        pass
    return 128 * 1024 * 1024


def _fused_vmem_limit():
    cap = _vmem_capacity_bytes()
    return int(min(cap * 3 // 4, 100 * 1024 * 1024))


def _fused_threshold_bytes():
    cap = _vmem_capacity_bytes()
    budget = min(cap * 3 // 4, 96 * 1024 * 1024)
    # v7x: 64 MiB VMEM and 2 TensorCores -> prefer the tiled (megacore-parallel)
    # path earlier; the fused kernel is one grid point on one core.
    if cap <= 64 * 1024 * 1024:
        budget = min(budget, 24 * 1024 * 1024)
    return int(budget)


def _tiled_vmem_limit():
    cap = _vmem_capacity_bytes()
    return int(min(max(cap // 2, 32 * 1024 * 1024), 64 * 1024 * 1024))


def _features_with_ones(x, npad, f_total, ones_col):
    """Pad x to (npad, f_total) with an all-ones column at `ones_col` (== x dim)."""
    n, d = x.shape
    assert ones_col == d
    ones = jnp.ones((n, 1), x.dtype)
    xp = jnp.concatenate([x, ones], axis=1)
    return jnp.pad(xp, ((0, npad - n), (0, f_total - d - 1)))


# ---------------------------------------------------------------------------
# Fused whole-graph kernel: both SAGEConv layers + ReLU in a single call.
# A is read from HBM once for BOTH layers; the hidden activation never leaves
# VMEM. Adjacency arrives as int8 and is cast to bf16 on the VPU (free slot).
# ---------------------------------------------------------------------------
def _sage_fused_kernel(adj_ref, x_ref, w0_ref, b0_ref, w1_ref, b1_ref, out_ref,
                       *, deg_col, approx):
    adj = adj_ref[...].astype(jnp.bfloat16)              # int8 -> bf16, exact 0/1
    h = x_ref[...]                                        # (N, F0) f32, col deg_col == 1

    # ---- layer 0: neighbor aggregation on the MXU ----
    # Column `deg_col` of x is all-ones, so the same matmul that produces
    # `neigh` also produces the in-degree in that column (no XLU reduction).
    neigh = jnp.dot(adj, h.astype(jnp.bfloat16),
                    preferred_element_type=jnp.float32)
    deg = neigh[:, deg_col:deg_col + 1]                   # (N, 1) in-degrees (exact)
    inv = pl.reciprocal(deg + 1.0, approx=approx)         # EUP; reused by both layers

    h = (neigh + h) * inv                                 # gcn mean incl. self
    h = (jnp.dot(h.astype(jnp.bfloat16), w0_ref[...],
                 preferred_element_type=jnp.float32) + b0_ref[...])
    h = jnp.maximum(h, 0.0)                               # ReLU (dropout = id in eval)

    # ---- layer 1 (h stays resident in VMEM/vregs) ----
    neigh = jnp.dot(adj, h.astype(jnp.bfloat16),
                    preferred_element_type=jnp.float32)
    h = (neigh + h) * inv
    out_ref[...] = (jnp.dot(h.astype(jnp.bfloat16), w1_ref[...],
                            preferred_element_type=jnp.float32) + b1_ref[...])


def _sage_fused_call(adj_i8, x_pad, w0p, b0p, w1p, b1p, *, deg_col, vmem_limit,
                     approx):
    n = adj_i8.shape[0]
    f_out = w1p.shape[1]
    vmem = pl.BlockSpec(memory_space=pltpu.MemorySpace.VMEM)
    return pl.pallas_call(
        functools.partial(_sage_fused_kernel, deg_col=deg_col, approx=approx),
        out_shape=jax.ShapeDtypeStruct((n, f_out), jnp.float32),
        in_specs=[vmem] * 6,
        out_specs=vmem,
        compiler_params=pltpu.CompilerParams(vmem_limit_bytes=vmem_limit),
    )(adj_i8, x_pad, w0p, b0p, w1p, b1p)


# ---------------------------------------------------------------------------
# Tiled single-layer kernels for graphs that do not fit the fused path.
# grid = (row blocks [parallel], contraction blocks [arbitrary, last]).
# The hot loop is a single int8->bf16 cast + MXU matmul per step.
# ---------------------------------------------------------------------------
def _sage_conv_resident_kernel(adj_ref, h_ref, w_ref, b_ref, out_ref, acc_ref,
                               *, deg_col, apply_relu, block_m, block_k, approx):
    # h_ref is the FULL (npad, f_in) feature matrix, VMEM-resident (constant
    # index map => DMA'd once), sliced per grid step.
    i = pl.program_id(0)
    k = pl.program_id(1)

    @pl.when(k == 0)
    def _():
        acc_ref[...] = jnp.zeros_like(acc_ref)

    ks = pl.multiple_of(k * block_k, block_k)
    acc_ref[...] += jnp.dot(adj_ref[...].astype(jnp.bfloat16),
                            h_ref[pl.ds(ks, block_k), :],
                            preferred_element_type=jnp.float32)

    @pl.when(k == pl.num_programs(1) - 1)
    def _():
        acc = acc_ref[...]
        deg = acc[:, deg_col:deg_col + 1]
        inv = pl.reciprocal(deg + 1.0, approx=approx)
        ms = pl.multiple_of(i * block_m, block_m)
        hs = h_ref[pl.ds(ms, block_m), :].astype(jnp.float32)
        h_agg = (acc + hs) * inv
        out = (jnp.dot(h_agg.astype(jnp.bfloat16), w_ref[...],
                       preferred_element_type=jnp.float32) + b_ref[...])
        if apply_relu:
            out = jnp.maximum(out, 0.0)
        out_ref[...] = out.astype(out_ref.dtype)


def _sage_conv_streamed_kernel(adj_ref, hs_ref, hk_ref, w_ref, b_ref, out_ref,
                               acc_ref, *, deg_col, apply_relu, approx):
    # Fallback when h does not fit VMEM: source rows streamed per k block.
    k = pl.program_id(1)

    @pl.when(k == 0)
    def _():
        acc_ref[...] = jnp.zeros_like(acc_ref)

    acc_ref[...] += jnp.dot(adj_ref[...].astype(jnp.bfloat16), hk_ref[...],
                            preferred_element_type=jnp.float32)

    @pl.when(k == pl.num_programs(1) - 1)
    def _():
        acc = acc_ref[...]
        deg = acc[:, deg_col:deg_col + 1]
        inv = pl.reciprocal(deg + 1.0, approx=approx)
        h_agg = (acc + hs_ref[...].astype(jnp.float32)) * inv
        out = (jnp.dot(h_agg.astype(jnp.bfloat16), w_ref[...],
                       preferred_element_type=jnp.float32) + b_ref[...])
        if apply_relu:
            out = jnp.maximum(out, 0.0)
        out_ref[...] = out.astype(out_ref.dtype)


def sage_conv_tiled(adj_i8, h_bf16, w, b, *, deg_col, apply_relu, out_dtype,
                    block_m, block_k, vmem_limit, approx, h_resident):
    npad = adj_i8.shape[0]
    f_in = h_bf16.shape[1]
    f_out = w.shape[1]
    assert npad % block_m == 0 and npad % block_k == 0
    grid = (npad // block_m, npad // block_k)

    if h_resident:
        kernel = functools.partial(
            _sage_conv_resident_kernel, deg_col=deg_col, apply_relu=apply_relu,
            block_m=block_m, block_k=block_k, approx=approx)
        in_specs = [
            pl.BlockSpec((block_m, block_k), lambda i, k: (i, k)),   # A int8 tile
            pl.BlockSpec((npad, f_in), lambda i, k: (0, 0)),         # resident h
            pl.BlockSpec((f_in, f_out), lambda i, k: (0, 0)),        # W (bf16)
            pl.BlockSpec((1, f_out), lambda i, k: (0, 0)),           # bias (f32)
        ]
        args = (adj_i8, h_bf16, w, b)
    else:
        kernel = functools.partial(
            _sage_conv_streamed_kernel, deg_col=deg_col, apply_relu=apply_relu,
            approx=approx)
        in_specs = [
            pl.BlockSpec((block_m, block_k), lambda i, k: (i, k)),   # A int8 tile
            pl.BlockSpec((block_m, f_in), lambda i, k: (i, 0)),      # h self rows
            pl.BlockSpec((block_k, f_in), lambda i, k: (k, 0)),      # h source rows
            pl.BlockSpec((f_in, f_out), lambda i, k: (0, 0)),        # W (bf16)
            pl.BlockSpec((1, f_out), lambda i, k: (0, 0)),           # bias (f32)
        ]
        args = (adj_i8, h_bf16, h_bf16, w, b)

    return pl.pallas_call(
        kernel,
        out_shape=jax.ShapeDtypeStruct((npad, f_out), out_dtype),
        grid_spec=pltpu.PrefetchScalarGridSpec(
            num_scalar_prefetch=0,
            grid=grid,
            in_specs=in_specs,
            out_specs=pl.BlockSpec((block_m, f_out), lambda i, k: (i, 0)),
            scratch_shapes=[pltpu.VMEM((block_m, f_in), jnp.float32)],
        ),
        compiler_params=pltpu.CompilerParams(
            dimension_semantics=("parallel", "arbitrary"),
            vmem_limit_bytes=vmem_limit),
    )(*args)


# ---------------------------------------------------------------------------
# One-time preprocessing (hoisted OUT of the jitted forward).
# ---------------------------------------------------------------------------
def prepare_sage(adj, params, in_size, hid_size, out_size, *,
                 use_tiled=None, block_m=512, block_k=512):
    n = adj.shape[0]
    # Feature widths padded to full 128-lane tiles (+1 slot for the ones column).
    f0 = _round_up(in_size + 1, LANES)
    f1 = _round_up(hid_size + 1, LANES)
    f2 = _round_up(out_size, LANES)

    (w0, b0), (w1, b1) = params
    w0p = _pad2(w0, f0, f1).astype(jnp.bfloat16)
    # Plant the layer-1 all-ones degree column via the layer-0 bias: w0p's
    # column `hid_size` is zero from padding, ReLU preserves 1.0, and bf16
    # stores 1.0 exactly -> no inter-layer scatter pass over h0.
    b0p = _pad2(jnp.reshape(b0, (1, -1)), 1, f1).at[0, hid_size].set(1.0)
    w1p = _pad2(w1, f1, f2).astype(jnp.bfloat16)
    b1p = _pad2(jnp.reshape(b1, (1, -1)), 1, f2)

    # Per-generation fused-vs-tiled dispatch (v5e/v6e push fused further;
    # v7x prefers tiled earlier).
    n_fused = _round_up(n, LANES)
    est_fused = 3 * n_fused * n_fused + 4 * n_fused * (f0 + 3 * max(f0, f1) + f2)
    if use_tiled is None:
        use_tiled = est_fused > _fused_threshold_bytes()

    if use_tiled:
        npad = _round_up(_round_up(n, block_m), block_k)
    else:
        npad = n_fused
    # Padded adjacency rows/cols are exactly zero -> degrees stay exact.
    adj_p = _pad2(adj, npad, npad).astype(jnp.int8)

    graph = dict(adj=adj_p, w0=w0p, b0=b0p, w1=w1p, b1=b1p)
    cfg = dict(n=n, npad=npad, in_size=in_size, hid_size=hid_size,
               out_size=out_size, f0=f0, f1=f1, f2=f2,
               use_tiled=bool(use_tiled), block_m=block_m, block_k=block_k,
               vmem_limit_fused=_fused_vmem_limit(),
               vmem_limit_tiled=_tiled_vmem_limit())
    return graph, cfg


# ---------------------------------------------------------------------------
# Full forward (eval mode; dropout = identity).
# ---------------------------------------------------------------------------
def sage_forward(graph, x, *, cfg, approx_recip=True):
    n, npad = cfg["n"], cfg["npad"]
    in_size, hid_size, out_size = cfg["in_size"], cfg["hid_size"], cfg["out_size"]
    f0, f1 = cfg["f0"], cfg["f1"]
    adj = graph["adj"]
    w0p, b0p, w1p, b1p = graph["w0"], graph["b0"], graph["w1"], graph["b1"]

    if not cfg["use_tiled"]:
        x_pad = _features_with_ones(x.astype(jnp.float32), npad, f0, in_size)
        out = _sage_fused_call(adj, x_pad, w0p, b0p, w1p, b1p,
                               deg_col=in_size,
                               vmem_limit=cfg["vmem_limit_fused"],
                               approx=approx_recip)
        return out[:n, :out_size]

    # Tiled / pipelined per-layer path.
    h = _features_with_ones(x, npad, f0, in_size).astype(jnp.bfloat16)
    h_resident = npad * max(f0, f1) * 2 <= 16 * 1024 * 1024
    tiled = functools.partial(
        sage_conv_tiled, block_m=cfg["block_m"], block_k=cfg["block_k"],
        vmem_limit=cfg["vmem_limit_tiled"], approx=approx_recip,
        h_resident=h_resident)

    h0 = tiled(adj, h, w0p, b0p, deg_col=in_size, apply_relu=True,
               out_dtype=jnp.bfloat16)
    # h0 already carries the all-ones column at `hid_size` (from b0p) -> the
    # layer-1 degree rides along the same MXU matmul with no extra pass.
    out = tiled(adj, h0, w1p, b1p, deg_col=hid_size, apply_relu=False,
                out_dtype=jnp.float32)
    return out[:n, :out_size]


def init_params(key, in_size, hid_size, out_size):
    """Mirror DGL SAGEConv ('gcn'): xavier_uniform fc_neigh weight, zero bias."""
    k0, k1 = jax.random.split(key)

    def xavier(k, fan_in, fan_out):
        limit = jnp.sqrt(6.0 / (fan_in + fan_out))
        return jax.random.uniform(k, (fan_in, fan_out), jnp.float32, -limit, limit)

    w0 = xavier(k0, in_size, hid_size)
    b0 = jnp.zeros((hid_size,), jnp.float32)
    w1 = xavier(k1, hid_size, out_size)
    b1 = jnp.zeros((out_size,), jnp.float32)
    return ((w0, b0), (w1, b1))


def sage_reference_np(adj, x, params):
    """float64 numpy gold reference of the same eval-mode forward."""
    a = np.asarray(adj, np.float64)
    h = np.asarray(x, np.float64)
    (w0, b0), (w1, b1) = params
    w0 = np.asarray(w0, np.float64)
    b0 = np.asarray(b0, np.float64).reshape(1, -1)
    w1 = np.asarray(w1, np.float64)
    b1 = np.asarray(b1, np.float64).reshape(1, -1)
    deg = a.sum(axis=1, keepdims=True)
    inv = 1.0 / (deg + 1.0)
    h = ((a @ h + h) * inv) @ w0 + b0
    h = np.maximum(h, 0.0)
    h = ((a @ h + h) * inv) @ w1 + b1
    return h


if __name__ == "__main__":
    key = jax.random.PRNGKey(0)
    k_adj, k_x, k_p, k_adj2, k_x2, k_p2 = jax.random.split(key, 6)

    in_size, hid_size, out_size = 16, 32, 8

    # --- small graph: fused both-layers-in-one-kernel path ---
    N = 64
    adj = (jax.random.uniform(k_adj, (N, N)) < 0.15).astype(jnp.float32)
    x = jax.random.normal(k_x, (N, in_size), jnp.float32)
    params = init_params(k_p, in_size, hid_size, out_size)

    graph1, cfg1 = prepare_sage(adj, params, in_size, hid_size, out_size,
                                use_tiled=False)
    fwd_fused = jax.jit(functools.partial(sage_forward, cfg=cfg1))
    out = fwd_fused(graph1, x)
    jax.block_until_ready(out)
    assert out.shape == (N, out_size) and out.dtype == jnp.float32
    ref = sage_reference_np(adj, x, params)
    assert np.allclose(np.asarray(out), ref, rtol=5e-2, atol=5e-2)

    # --- medium graph: tiled / pipelined per-layer path (forced) ---
    N2 = 1024
    adj2 = (jax.random.uniform(k_adj2, (N2, N2)) < 0.02).astype(jnp.float32)
    x2 = jax.random.normal(k_x2, (N2, in_size), jnp.float32)
    params2 = init_params(k_p2, in_size, hid_size, out_size)

    graph2, cfg2 = prepare_sage(adj2, params2, in_size, hid_size, out_size,
                                use_tiled=True, block_m=512, block_k=512)
    fwd_tiled = jax.jit(functools.partial(sage_forward, cfg=cfg2))
    out2 = fwd_tiled(graph2, x2)
    jax.block_until_ready(out2)
    assert out2.shape == (N2, out_size) and out2.dtype == jnp.float32
    ref2 = sage_reference_np(adj2, x2, params2)
    assert np.allclose(np.asarray(out2), ref2, rtol=5e-2, atol=5e-2)

    print("KERNEL_OK")
</pallas_src>

<mosaic_0001>
module attributes {stable_mosaic.version = 11 : i64} {
  func.func @_sage_fused_kernel(%arg0: memref<128x128xi8, #tpu.memory_space<vmem>>, %arg1: memref<128x128xf32, #tpu.memory_space<vmem>>, %arg2: memref<128x128xbf16, #tpu.memory_space<vmem>>, %arg3: memref<1x128xf32, #tpu.memory_space<vmem>>, %arg4: memref<128x128xbf16, #tpu.memory_space<vmem>>, %arg5: memref<1x128xf32, #tpu.memory_space<vmem>>, %arg6: memref<128x128xf32, #tpu.memory_space<vmem>>) attributes {dimension_semantics = [], scalar_prefetch = 0 : i64, scratch_operands = 0 : i64, tpu.core_type = #tpu.core_type<tc>} {
    %c0 = arith.constant 0 : index
    %c0_0 = arith.constant 0 : index
    %0 = vector.load %arg0[%c0, %c0_0] : memref<128x128xi8, #tpu.memory_space<vmem>>, vector<128x128xi8>
    %1 = arith.sitofp %0 : vector<128x128xi8> to vector<128x128xbf16>
    %c0_1 = arith.constant 0 : index
    %c0_2 = arith.constant 0 : index
    %2 = vector.load %arg1[%c0_1, %c0_2] : memref<128x128xf32, #tpu.memory_space<vmem>>, vector<128x128xf32>
    %3 = arith.truncf %2 : vector<128x128xf32> to vector<128x128xbf16>
    %cst = arith.constant dense<0.000000e+00> : vector<128x128xf32>
    %4 = tpu.matmul %1, %3, %cst {dimension_numbers = #tpu.dot_dimension_numbers<[1], [0], [0], [1], [0, 0, 1, 1], [], []>} : vector<128x128xbf16>, vector<128x128xbf16>, vector<128x128xf32> -> vector<128x128xf32>
    %5 = vector.extract_strided_slice %4 {offsets = [0, 16], sizes = [128, 1], strides = [1, 1]} : vector<128x128xf32> to vector<128x1xf32>
    %cst_3 = arith.constant 1.000000e+00 : f32
    %6 = vector.broadcast %cst_3 : f32 to vector<128x1xf32>
    %7 = arith.addf %5, %6 : vector<128x1xf32>
    %8 = tpu.reciprocal %7 {approx = true} : vector<128x1xf32> -> vector<128x1xf32>
    %9 = arith.addf %4, %2 : vector<128x128xf32>
    %10 = vector.broadcast %8 : vector<128x1xf32> to vector<128x128xf32>
    %11 = arith.mulf %9, %10 : vector<128x128xf32>
    %12 = arith.truncf %11 : vector<128x128xf32> to vector<128x128xbf16>
    %c0_4 = arith.constant 0 : index
    %c0_5 = arith.constant 0 : index
    %13 = vector.load %arg2[%c0_4, %c0_5] : memref<128x128xbf16, #tpu.memory_space<vmem>>, vector<128x128xbf16>
    %cst_6 = arith.constant dense<0.000000e+00> : vector<128x128xf32>
    %14 = tpu.matmul %12, %13, %cst_6 {dimension_numbers = #tpu.dot_dimension_numbers<[1], [0], [0], [1], [0, 0, 1, 1], [], []>} : vector<128x128xbf16>, vector<128x128xbf16>, vector<128x128xf32> -> vector<128x128xf32>
    %c0_7 = arith.constant 0 : index
    %c0_8 = arith.constant 0 : index
    %15 = vector.load %arg3[%c0_7, %c0_8] : memref<1x128xf32, #tpu.memory_space<vmem>>, vector<1x128xf32>
    %16 = vector.broadcast %15 : vector<1x128xf32> to vector<128x128xf32>
    %17 = arith.addf %14, %16 : vector<128x128xf32>
    %cst_9 = arith.constant 0.000000e+00 : f32
    %18 = vector.broadcast %cst_9 : f32 to vector<128x128xf32>
    %19 = arith.maximumf %17, %18 : vector<128x128xf32>
    %20 = arith.truncf %19 : vector<128x128xf32> to vector<128x128xbf16>
    %cst_10 = arith.constant dense<0.000000e+00> : vector<128x128xf32>
    %21 = tpu.matmul %1, %20, %cst_10 {dimension_numbers = #tpu.dot_dimension_numbers<[1], [0], [0], [1], [0, 0, 1, 1], [], []>} : vector<128x128xbf16>, vector<128x128xbf16>, vector<128x128xf32> -> vector<128x128xf32>
    %22 = arith.addf %21, %19 : vector<128x128xf32>
    %23 = vector.broadcast %8 : vector<128x1xf32> to vector<128x128xf32>
    %24 = arith.mulf %22, %23 : vector<128x128xf32>
    %25 = arith.truncf %24 : vector<128x128xf32> to vector<128x128xbf16>
    %c0_11 = arith.constant 0 : index
    %c0_12 = arith.constant 0 : index
    %26 = vector.load %arg4[%c0_11, %c0_12] : memref<128x128xbf16, #tpu.memory_space<vmem>>, vector<128x128xbf16>
    %cst_13 = arith.constant dense<0.000000e+00> : vector<128x128xf32>
    %27 = tpu.matmul %25, %26, %cst_13 {dimension_numbers = #tpu.dot_dimension_numbers<[1], [0], [0], [1], [0, 0, 1, 1], [], []>} : vector<128x128xbf16>, vector<128x128xbf16>, vector<128x128xf32> -> vector<128x128xf32>
    %c0_14 = arith.constant 0 : index
    %c0_15 = arith.constant 0 : index
    %28 = vector.load %arg5[%c0_14, %c0_15] : memref<1x128xf32, #tpu.memory_space<vmem>>, vector<1x128xf32>
    %29 = vector.broadcast %28 : vector<1x128xf32> to vector<128x128xf32>
    %30 = arith.addf %27, %29 : vector<128x128xf32>
    %c0_16 = arith.constant 0 : index
    %c0_17 = arith.constant 0 : index
    %31 = vector.load %arg6[%c0_16, %c0_17] : memref<128x128xf32, #tpu.memory_space<vmem>>, vector<128x128xf32>
    tpu.vector_store %arg6[%c0_16, %c0_17], %30 {strides = array<i32>} : memref<128x128xf32, #tpu.memory_space<vmem>>, vector<128x128xf32>,
    return
  }
}

</mosaic_0001>

<llo_original>
// kernel: sage_forward.1
$region0: #{sage_forward.1}
  #allocation0 [shape = 'u32[]', space=smem, size = 0x4, offset = 0x4, fixed_abs, tag = 'smem constant byte address 0x4 - core index']
  #allocation1 [shape = 'u32[144,128]{1,0:T(1,128)}', space=vmem, size = 0x12000, scoped, tag = 'internal scratch']
  %s0 = inlined_call_operand.hbm [shape: s8[128,128], index: 0, kind: input, shape index: {}]
  %s1 = inlined_call_operand.hbm [shape: f32[128,128], index: 1, kind: input, shape index: {}]
  %s2 = inlined_call_operand.hbm [shape: bf16[128,128], index: 2, kind: input, shape index: {}]
  %s3 = inlined_call_operand.hbm [shape: f32[1,128], index: 3, kind: input, shape index: {}]
  %s4 = inlined_call_operand.hbm [shape: bf16[128,128], index: 4, kind: input, shape index: {}]
  %s5 = inlined_call_operand.hbm [shape: f32[1,128], index: 5, kind: input, shape index: {}]
  %s6 = inlined_call_operand.hbm [shape: f32[128,128], index: 6, kind: output, shape index: {}]
  %s7 = sld [smem:[#allocation0]]
  $region58: #{sage_forward.1} parent=0
    _
  %s9 = ssub.s32 1, %s7
  %s10 = scalar_select 0, %s9, %s7
  $region1: #{sage_forward.1} parent=0
    #allocation2 [shape = 'u8[16384]{0}', space=vmem, size = 0x4000, scoped, tag = 'input window, operand 0, single buffered']
    #allocation3 [shape = 's32[1]{0}', space=sflag, size = 0x4, scoped, tag = 'scoped memory for sage_forward.1']
    #allocation4 [shape = 's32[1]{0}', space=sflag, size = 0x4, scoped, tag = 'scoped memory for sage_forward.1']
    #allocation5 [shape = 'u8[65536]{0}', space=vmem, size = 0x10000, scoped, tag = 'input window, operand 1, single buffered']
    #allocation6 [shape = 's32[1]{0}', space=sflag, size = 0x4, scoped, tag = 'scoped memory for sage_forward.1']
    #allocation7 [shape = 'u8[32768]{0}', space=vmem, size = 0x8000, scoped, tag = 'input window, operand 2, single buffered']
    #allocation8 [shape = 'u8[512]{0}', space=vmem, size = 0x400, scoped, tag = 'input window, operand 3, single buffered']
    #allocation9 [shape = 's32[1]{0}', space=sflag, size = 0x4, scoped, tag = 'scoped memory for sage_forward.1']
    #allocation10 [shape = 'u8[32768]{0}', space=vmem, size = 0x8000, scoped, tag = 'input window, operand 4, single buffered']
    #allocation11 [shape = 'u8[512]{0}', space=vmem, size = 0x400, scoped, tag = 'input window, operand 5, single buffered']
    #allocation12 [shape = 's32[1]{0}', space=sflag, size = 0x4, scoped, tag = 'scoped memory for sage_forward.1']
    #allocation13 [shape = 'u8[65536]{0}', space=vmem, size = 0x10000, scoped, tag = 'output window, operand 0, single buffered']
    %11 = vsyncpa [#allocation3], 0
    %12 = vsyncpa [#allocation6], 0
    %13 = vsyncpa [#allocation9], 0
    %14 = vsyncpa [#allocation12], 0
    %15 = vsyncpa [#allocation4], 0
    // Predicated region
    $region2: #{sage_forward.1} parent=1 // pred_check
      _
    $region3: #{sage_forward.1} parent=1 // pred_check_branch
      %17 = sbr.rel (0) target = $region5
    $region4: #{sage_forward.1} parent=1 // pred_region
      %s19 = ssub.s32 512, 512
      %20 = vsyncadd [#allocation3], %s19
      %s21 = sshll.u32 [#allocation2], 4
      %s22 = int_to_ptr.vmem [resolvable:$true] %s21
      %27 = dma.hbm_to_vmem [thread:$0]  %s0, 512, %s22, [#allocation3], 128, 128, 8
    $region5: #{sage_forward.1} parent=1 // pred_fallthru
      _
    // Predicated region
    $region6: #{sage_forward.1} parent=1 // pred_check
      _
    $region7: #{sage_forward.1} parent=1 // pred_check_branch
      %29 = sbr.rel (0) target = $region9
    $region8: #{sage_forward.1} parent=1 // pred_region
      %s31 = ssub.s32 2048, 2048
      %32 = vsyncadd [#allocation6], %s31
      %s33 = sshll.u32 [#allocation5], 4
      %s34 = int_to_ptr.vmem [resolvable:$true] %s33
      %39 = dma.hbm_to_vmem [thread:$0]  %s1, 2048, %s34, [#allocation6], 128, 128, 8
    $region9: #{sage_forward.1} parent=1 // pred_fallthru
      _
    // Predicated region
    $region10: #{sage_forward.1} parent=1 // pred_check
      _
    $region11: #{sage_forward.1} parent=1 // pred_check_branch
      %41 = sbr.rel (0) target = $region13
    $region12: #{sage_forward.1} parent=1 // pred_region
      %s43 = ssub.s32 1024, 1024
      %44 = vsyncadd [#allocation6], %s43
      %s45 = sshll.u32 [#allocation7], 4
      %s46 = int_to_ptr.vmem [resolvable:$true] %s45
      %51 = dma.hbm_to_vmem [thread:$0]  %s2, 1024, %s46, [#allocation6], 64, 64, 4
    $region13: #{sage_forward.1} parent=1 // pred_fallthru
      _
    // Predicated region
    $region14: #{sage_forward.1} parent=1 // pred_check
      _
    $region15: #{sage_forward.1} parent=1 // pred_check_branch
      %53 = sbr.rel (0) target = $region17
    $region16: #{sage_forward.1} parent=1 // pred_region
      %s55 = ssub.s32 16, 16
      %56 = vsyncadd [#allocation9], %s55
      %s58 = sshll.u32 [#allocation8], 4
      %s59 = int_to_ptr.vmem [resolvable:$true] %s58
      %61 = dma.hbm_to_vmem [thread:$0]  %s3, 16, %s59, [#allocation9]
    $region17: #{sage_forward.1} parent=1 // pred_fallthru
      _
    // Predicated region
    $region18: #{sage_forward.1} parent=1 // pred_check
      _
    $region19: #{sage_forward.1} parent=1 // pred_check_branch
      %63 = sbr.rel (0) target = $region21
    $region20: #{sage_forward.1} parent=1 // pred_region
      %s65 = ssub.s32 1024, 1024
      %66 = vsyncadd [#allocation9], %s65
      %s67 = sshll.u32 [#allocation10], 4
      %s68 = int_to_ptr.vmem [resolvable:$true] %s67
      %73 = dma.hbm_to_vmem [thread:$0]  %s4, 1024, %s68, [#allocation9], 64, 64, 4
    $region21: #{sage_forward.1} parent=1 // pred_fallthru
      _
    // Predicated region
    $region22: #{sage_forward.1} parent=1 // pred_check
      _
    $region23: #{sage_forward.1} parent=1 // pred_check_branch
      %75 = sbr.rel (0) target = $region25
    $region24: #{sage_forward.1} parent=1 // pred_region
      %s77 = ssub.s32 16, 16
      %78 = vsyncadd [#allocation12], %s77
      %s80 = sshll.u32 [#allocation11], 4
      %s81 = int_to_ptr.vmem [resolvable:$true] %s80
      %83 = dma.hbm_to_vmem [thread:$0]  %s5, 16, %s81, [#allocation12]
    $region25: #{sage_forward.1} parent=1 // pred_fallthru
      _
    // Predicated region
    $region26: #{sage_forward.1} parent=1 // pred_check
      _
    $region27: #{sage_forward.1} parent=1 // pred_check_branch
      %85 = sbr.rel (0) target = $region29
    $region28: #{sage_forward.1} parent=1 // pred_region
      %86 = dma.done [#allocation3], 512
    $region29: #{sage_forward.1} parent=1 // pred_fallthru
      _
    // Predicated region
    $region30: #{sage_forward.1} parent=1 // pred_check
      _
    $region31: #{sage_forward.1} parent=1 // pred_check_branch
      %88 = sbr.rel (0) target = $region33
    $region32: #{sage_forward.1} parent=1 // pred_region
      %89 = dma.done [#allocation6], 2048
    $region33: #{sage_forward.1} parent=1 // pred_fallthru
      _
    // Predicated region
    $region34: #{sage_forward.1} parent=1 // pred_check
      _
    $region35: #{sage_forward.1} parent=1 // pred_check_branch
      %91 = sbr.rel (0) target = $region37
    $region36: #{sage_forward.1} parent=1 // pred_region
      %92 = dma.done [#allocation6], 1024
    $region37: #{sage_forward.1} parent=1 // pred_fallthru
      _
    // Predicated region
    $region38: #{sage_forward.1} parent=1 // pred_check
      _
    $region39: #{sage_forward.1} parent=1 // pred_check_branch
      %94 = sbr.rel (0) target = $region41
    $region40: #{sage_forward.1} parent=1 // pred_region
      %95 = dma.done [#allocation9], 16
    $region41: #{sage_forward.1} parent=1 // pred_fallthru
      _
    // Predicated region
    $region42: #{sage_forward.1} parent=1 // pred_check
      _
    $region43: #{sage_forward.1} parent=1 // pred_check_branch
      %97 = sbr.rel (0) target = $region45
    $region44: #{sage_forward.1} parent=1 // pred_region
      %98 = dma.done [#allocation9], 1024
    $region45: #{sage_forward.1} parent=1 // pred_fallthru
      _
    // Predicated region
    $region46: #{sage_forward.1} parent=1 // pred_check
      _
    $region47: #{sage_forward.1} parent=1 // pred_check_branch
      %100 = sbr.rel (0) target = $region49
    $region48: #{sage_forward.1} parent=1 // pred_region
      %101 = dma.done [#allocation12], 16
    $region49: #{sage_forward.1} parent=1 // pred_fallthru
      _
    %v103 = vld [vmem:[#allocation2] sm:$0xff]
    %v104 = vld [vmem:[#allocation2 + $0x8] sm:$0xff]
    %v105 = vld [vmem:[#allocation2 + $0x10] sm:$0xff]
    %v106 = vld [vmem:[#allocation2 + $0x18] sm:$0xff]
    %v107 = vunpack.c.l.s8.bf16 %v103
    %v108 = vunpack.c.h.s8.bf16 %v103
    %v109 = vunpack.c.l.s8.bf16 %v104
    %v110 = vunpack.c.h.s8.bf16 %v104
    %v111 = vunpack.c.l.s8.bf16 %v105
    %v112 = vunpack.c.h.s8.bf16 %v105
    %v113 = vunpack.c.l.s8.bf16 %v106
    %v114 = vunpack.c.h.s8.bf16 %v106
    %v115 = vld [vmem:[#allocation5] sm:$0xff]
    %v116 = vld [vmem:[#allocation5 + $0x8] sm:$0xff]
    %v117 = vld [vmem:[#allocation5 + $0x10] sm:$0xff]
    %v118 = vld [vmem:[#allocation5 + $0x18] sm:$0xff]
    %v119 = vld [vmem:[#allocation5 + $0x20] sm:$0xff]
    %v120 = vld [vmem:[#allocation5 + $0x28] sm:$0xff]
    %v121 = vld [vmem:[#allocation5 + $0x30] sm:$0xff]
    %v122 = vld [vmem:[#allocation5 + $0x38] sm:$0xff]
    %v123 = vld [vmem:[#allocation5 + $0x40] sm:$0xff]
    %v124 = vld [vmem:[#allocation5 + $0x48] sm:$0xff]
    %v125 = vld [vmem:[#allocation5 + $0x50] sm:$0xff]
    %v126 = vld [vmem:[#allocation5 + $0x58] sm:$0xff]
    %v127 = vld [vmem:[#allocation5 + $0x60] sm:$0xff]
    %v128 = vld [vmem:[#allocation5 + $0x68] sm:$0xff]
    %v129 = vld [vmem:[#allocation5 + $0x70] sm:$0xff]
    %v130 = vld [vmem:[#allocation5 + $0x78] sm:$0xff]
    %v131 = vpack.c.bf16 %v116, %v115
    %v132 = vpack.c.bf16 %v118, %v117
    %v133 = vpack.c.bf16 %v120, %v119
    %v134 = vpack.c.bf16 %v122, %v121
    %v135 = vpack.c.bf16 %v124, %v123
    %v136 = vpack.c.bf16 %v126, %v125
    %v137 = vpack.c.bf16 %v128, %v127
    %v138 = vpack.c.bf16 %v130, %v129
    %139 = vmatprep.subr.bf16.mxu0 0
    %140 = vmatpush1.bf16.msra.mxu0 %v131
    %141 = vmatprep.subr.bf16.mxu0 0
    %142 = vmatpush1.bf16.msra.mxu0 %v132
    %143 = vmatprep.subr.bf16.mxu0 0
    %144 = vmatpush1.bf16.msra.mxu0 %v133
    %145 = vmatprep.subr.bf16.mxu0 0
    %146 = vmatpush1.bf16.msra.mxu0 %v134
    %147 = vmatprep.subr.bf16.mxu0 0
    %148 = vmatpush1.bf16.msra.mxu0 %v135
    %149 = vmatprep.subr.bf16.mxu0 0
    %150 = vmatpush1.bf16.msra.mxu0 %v136
    %151 = vmatprep.subr.bf16.mxu0 0
    %152 = vmatpush1.bf16.msra.mxu0 %v137
    %153 = vmatprep.subr.bf16.mxu0 0
    %154 = vmatpush1.bf16.msra.mxu0 %v138
    %155 = vmatprep.subr.bf16.mxu0 0
    %156 = vmatpush1.bf16.msra.mxu0 0
    %157 = vmatprep.subr.bf16.mxu0 0
    %158 = vmatpush1.bf16.msra.mxu0 0
    %159 = vmatprep.subr.bf16.mxu0 0
    %160 = vmatpush1.bf16.msra.mxu0 0
    %161 = vmatprep.subr.bf16.mxu0 0
    %162 = vmatpush1.bf16.msra.mxu0 0
    %163 = vmatprep.subr.bf16.mxu0 0
    %164 = vmatpush1.bf16.msra.mxu0 0
    %165 = vmatprep.subr.bf16.mxu0 0
    %166 = vmatpush1.bf16.msra.mxu0 0
    %167 = vmatprep.subr.bf16.mxu0 0
    %168 = vmatpush1.bf16.msra.mxu0 0
    %169 = vmatprep.subr.bf16.mxu0 0
    %170 = vmatpush1.bf16.msra.mxu0 0
    %171 = vmatprep.mubr.bf16.mxu0 0
    %172 = vmatmul.mubr.bf16.gmra.mrb[0].mxu0 %v107
    %v173 = vpop.f32.mrb[0].mxu0
    %v174 = vadd.f32 0.0, %v173
    %v175 = vpop.f32.mrb[0].mxu0
    %v176 = vpop.f32.mrb[0].mxu0
    %v177 = vadd.f32 0.0, %v176
    %v178 = vpop.f32.mrb[0].mxu0
    %179 = vmatprep.mubr.bf16.mxu0 0
    %180 = vmatmul.mubr.bf16.gmra.mrb[0].mxu0 %v108
    %v181 = vpop.f32.mrb[0].mxu0
    %v182 = vadd.f32 0.0, %v181
    %v183 = vpop.f32.mrb[0].mxu0
    %v184 = vpop.f32.mrb[0].mxu0
    %v185 = vadd.f32 0.0, %v184
    %v186 = vpop.f32.mrb[0].mxu0
    %187 = vmatprep.mubr.bf16.mxu0 0
    %188 = vmatmul.mubr.bf16.gmra.mrb[0].mxu0 %v109
    %v189 = vpop.f32.mrb[0].mxu0
    %v190 = vadd.f32 0.0, %v189
    %v191 = vpop.f32.mrb[0].mxu0
    %v192 = vpop.f32.mrb[0].mxu0
    %v193 = vadd.f32 0.0, %v192
    %v194 = vpop.f32.mrb[0].mxu0
    %195 = vmatprep.mubr.bf16.mxu0 0
    %196 = vmatmul.mubr.bf16.gmra.mrb[0].mxu0 %v110
    %v197 = vpop.f32.mrb[0].mxu0
    %v198 = vadd.f32 0.0, %v197
    %v199 = vpop.f32.mrb[0].mxu0
    %v200 = vpop.f32.mrb[0].mxu0
    %v201 = vadd.f32 0.0, %v200
    %v202 = vpop.f32.mrb[0].mxu0
    %203 = vmatprep.mubr.bf16.mxu0 0
    %204 = vmatmul.mubr.bf16.gmra.mrb[0].mxu0 %v111
    %v205 = vpop.f32.mrb[0].mxu0
    %v206 = vadd.f32 0.0, %v205
    %v207 = vpop.f32.mrb[0].mxu0
    %v208 = vpop.f32.mrb[0].mxu0
    %v209 = vadd.f32 0.0, %v208
    %v210 = vpop.f32.mrb[0].mxu0
    %211 = vmatprep.mubr.bf16.mxu0 0
    %212 = vmatmul.mubr.bf16.gmra.mrb[0].mxu0 %v112
    %v213 = vpop.f32.mrb[0].mxu0
    %v214 = vadd.f32 0.0, %v213
    %v215 = vpop.f32.mrb[0].mxu0
    %v216 = vpop.f32.mrb[0].mxu0
    %v217 = vadd.f32 0.0, %v216
    %v218 = vpop.f32.mrb[0].mxu0
    %219 = vmatprep.mubr.bf16.mxu0 0
    %220 = vmatmul.mubr.bf16.gmra.mrb[0].mxu0 %v113
    %v221 = vpop.f32.mrb[0].mxu0
    %v222 = vadd.f32 0.0, %v221
    %v223 = vpop.f32.mrb[0].mxu0
    %v224 = vpop.f32.mrb[0].mxu0
    %v225 = vadd.f32 0.0, %v224
    %v226 = vpop.f32.mrb[0].mxu0
    %227 = vmatprep.mubr.bf16.mxu0 0
    %228 = vmatmul.mubr.bf16.gmra.mrb[0].mxu0 %v114
    %v229 = vpop.f32.mrb[0].mxu0
    %v230 = vadd.f32 0.0, %v229
    %v231 = vpop.f32.mrb[0].mxu0
    %v232 = vpop.f32.mrb[0].mxu0
    %v233 = vadd.f32 0.0, %v232
    %v234 = vpop.f32.mrb[0].mxu0
    %235 = vdwg.mxu0
    %v236 = vadd.f32 %v174, 1.0
    %v237 = vadd.f32 %v177, 1.0
    %v238 = vadd.f32 %v182, 1.0
    %v239 = vadd.f32 %v185, 1.0
    %v240 = vadd.f32 %v190, 1.0
    %v241 = vadd.f32 %v193, 1.0
    %v242 = vadd.f32 %v198, 1.0
    %v243 = vadd.f32 %v201, 1.0
    %v244 = vadd.f32 %v206, 1.0
    %v245 = vadd.f32 %v209, 1.0
    %v246 = vadd.f32 %v214, 1.0
    %v247 = vadd.f32 %v217, 1.0
    %v248 = vadd.f32 %v222, 1.0
    %v249 = vadd.f32 %v225, 1.0
    %v250 = vadd.f32 %v230, 1.0
    %v251 = vadd.f32 %v233, 1.0
    %v252 = vrcp.pop %v236
    %v253 = vrcp.pop %v237
    %v254 = vrcp.pop %v238
    %v255 = vrcp.pop %v239
    %v256 = vrcp.pop %v240
    %v257 = vrcp.pop %v241
    %v258 = vrcp.pop %v242
    %v259 = vrcp.pop %v243
    %v260 = vrcp.pop %v244
    %v261 = vrcp.pop %v245
    %v262 = vrcp.pop %v246
    %v263 = vrcp.pop %v247
    %v264 = vrcp.pop %v248
    %v265 = vrcp.pop %v249
    %v266 = vrcp.pop %v250
    %v267 = vrcp.pop %v251
    %v268 = vadd.f32 %v174, %v115
    %v269 = vadd.f32 %v177, %v116
    %v270 = vadd.f32 %v182, %v117
    %v271 = vadd.f32 %v185, %v118
    %v272 = vadd.f32 %v190, %v119
    %v273 = vadd.f32 %v193, %v120
    %v274 = vadd.f32 %v198, %v121
    %v275 = vadd.f32 %v201, %v122
    %v276 = vadd.f32 %v206, %v123
    %v277 = vadd.f32 %v209, %v124
    %v278 = vadd.f32 %v214, %v125
    %v279 = vadd.f32 %v217, %v126
    %v280 = vadd.f32 %v222, %v127
    %v281 = vadd.f32 %v225, %v128
    %v282 = vadd.f32 %v230, %v129
    %v283 = vadd.f32 %v233, %v130
    %285 = vset.pattern.permute.xlu0 16
    %286 = vperm.xlu0 %285, %v252
    %v287 = vpop.permute.xlu0 %286
    %290 = vset.pattern.permute.xlu0 16
    %291 = vperm.xlu0 %290, %v253
    %v292 = vpop.permute.xlu0 %291
    %295 = vset.pattern.permute.xlu0 16
    %296 = vperm.xlu0 %295, %v254
    %v297 = vpop.permute.xlu0 %296
    %300 = vset.pattern.permute.xlu0 16
    %301 = vperm.xlu0 %300, %v255
    %v302 = vpop.permute.xlu0 %301
    %305 = vset.pattern.permute.xlu0 16
    %306 = vperm.xlu0 %305, %v256
    %v307 = vpop.permute.xlu0 %306
    %310 = vset.pattern.permute.xlu0 16
    %311 = vperm.xlu0 %310, %v257
    %v312 = vpop.permute.xlu0 %311
    %315 = vset.pattern.permute.xlu0 16
    %316 = vperm.xlu0 %315, %v258
    %v317 = vpop.permute.xlu0 %316
    %320 = vset.pattern.permute.xlu0 16
    %321 = vperm.xlu0 %320, %v259
    %v322 = vpop.permute.xlu0 %321
    %325 = vset.pattern.permute.xlu0 16
    %326 = vperm.xlu0 %325, %v260
    %v327 = vpop.permute.xlu0 %326
    %330 = vset.pattern.permute.xlu0 16
    %331 = vperm.xlu0 %330, %v261
    %v332 = vpop.permute.xlu0 %331
    %335 = vset.pattern.permute.xlu0 16
    %336 = vperm.xlu0 %335, %v262
    %v337 = vpop.permute.xlu0 %336
    %340 = vset.pattern.permute.xlu0 16
    %341 = vperm.xlu0 %340, %v263
    %v342 = vpop.permute.xlu0 %341
    %345 = vset.pattern.permute.xlu0 16
    %346 = vperm.xlu0 %345, %v264
    %v347 = vpop.permute.xlu0 %346
    %350 = vset.pattern.permute.xlu0 16
    %351 = vperm.xlu0 %350, %v265
    %v352 = vpop.permute.xlu0 %351
    %355 = vset.pattern.permute.xlu0 16
    %356 = vperm.xlu0 %355, %v266
    %v357 = vpop.permute.xlu0 %356
    %360 = vset.pattern.permute.xlu0 16
    %361 = vperm.xlu0 %360, %v267
    %v362 = vpop.permute.xlu0 %361
    %v364 = vmul.f32 %v268, %v287
    %v365 = vmul.f32 %v269, %v292
    %v366 = vmul.f32 %v270, %v297
    %v367 = vmul.f32 %v271, %v302
    %v368 = vmul.f32 %v272, %v307
    %v369 = vmul.f32 %v273, %v312
    %v370 = vmul.f32 %v274, %v317
    %v371 = vmul.f32 %v275, %v322
    %v372 = vmul.f32 %v276, %v327
    %v373 = vmul.f32 %v277, %v332
    %v374 = vmul.f32 %v278, %v337
    %v375 = vmul.f32 %v279, %v342
    %v376 = vmul.f32 %v280, %v347
    %v377 = vmul.f32 %v281, %v352
    %v378 = vmul.f32 %v282, %v357
    %v379 = vmul.f32 %v283, %v362
    %v380 = vpack.c.bf16 %v365, %v364
    %v381 = vpack.c.bf16 %v367, %v366
    %v382 = vpack.c.bf16 %v369, %v368
    %v383 = vpack.c.bf16 %v371, %v370
    %v384 = vpack.c.bf16 %v373, %v372
    %v385 = vpack.c.bf16 %v375, %v374
    %v386 = vpack.c.bf16 %v377, %v376
    %v387 = vpack.c.bf16 %v379, %v378
    %v388 = vld [vmem:[#allocation7] sm:$0xf]
    %v389 = vld [vmem:[#allocation7 + $0x4] sm:$0xf]
    %v390 = vld [vmem:[#allocation7 + $0x8] sm:$0xf]
    %v391 = vld [vmem:[#allocation7 + $0xc] sm:$0xf]
    %v392 = vld [vmem:[#allocation7 + $0x10] sm:$0xf]
    %v393 = vld [vmem:[#allocation7 + $0x14] sm:$0xf]
    %v394 = vld [vmem:[#allocation7 + $0x18] sm:$0xf]
    %v395 = vld [vmem:[#allocation7 + $0x1c] sm:$0xf]
    %v396 = vld [vmem:[#allocation7 + $0x20] sm:$0xf]
    %v397 = vld [vmem:[#allocation7 + $0x24] sm:$0xf]
    %v398 = vld [vmem:[#allocation7 + $0x28] sm:$0xf]
    %v399 = vld [vmem:[#allocation7 + $0x2c] sm:$0xf]
    %v400 = vld [vmem:[#allocation7 + $0x30] sm:$0xf]
    %v401 = vld [vmem:[#allocation7 + $0x34] sm:$0xf]
    %v402 = vld [vmem:[#allocation7 + $0x38] sm:$0xf]
    %v403 = vld [vmem:[#allocation7 + $0x3c] sm:$0xf]
    %v404 = vld [vmem:[#allocation8] sm:$0x1]
    %v406 = vlaneseq
    %v407 = vshrl.u32 %v406, 7
    %v408 = vsub.s32 0, %v407
    %v409 = vrot.slane %v404, %v408
    %v427 = vunpack.c.l.b16 %v388
    %v428 = vunpack.c.l.b16 %v389
    %v429 = vunpack.c.l.b16 %v390
    %v430 = vunpack.c.l.b16 %v391
    %v431 = vunpack.c.l.b16 %v392
    %v432 = vunpack.c.l.b16 %v393
    %v433 = vunpack.c.l.b16 %v394
    %v434 = vunpack.c.l.b16 %v395
    %v435 = vunpack.c.l.b16 %v396
    %v436 = vunpack.c.l.b16 %v397
    %v437 = vunpack.c.l.b16 %v398
    %v438 = vunpack.c.l.b16 %v399
    %v439 = vunpack.c.l.b16 %v400
    %v440 = vunpack.c.l.b16 %v401
    %v441 = vunpack.c.l.b16 %v402
    %v442 = vunpack.c.l.b16 %v403
    %v443 = vpack.c.b16 %v428, %v427
    %v444 = vpack.c.b16 %v430, %v429
    %v445 = vpack.c.b16 %v432, %v431
    %v446 = vpack.c.b16 %v434, %v433
    %v447 = vpack.c.b16 %v436, %v435
    %v448 = vpack.c.b16 %v438, %v437
    %v449 = vpack.c.b16 %v440, %v439
    %v450 = vpack.c.b16 %v442, %v441
    %459 = vmatprep.subr.bf16.mxu0 0
    %460 = vmatpush1.bf16.msra.mxu0 %v443
    %461 = vmatprep.subr.bf16.mxu0 0
    %462 = vmatpush1.bf16.msra.mxu0 %v444
    %463 = vmatprep.subr.bf16.mxu0 0
    %464 = vmatpush1.bf16.msra.mxu0 %v445
    %465 = vmatprep.subr.bf16.mxu0 0
    %466 = vmatpush1.bf16.msra.mxu0 %v446
    %467 = vmatprep.subr.bf16.mxu0 0
    %468 = vmatpush1.bf16.msra.mxu0 %v447
    %469 = vmatprep.subr.bf16.mxu0 0
    %470 = vmatpush1.bf16.msra.mxu0 %v448
    %471 = vmatprep.subr.bf16.mxu0 0
    %472 = vmatpush1.bf16.msra.mxu0 %v449
    %473 = vmatprep.subr.bf16.mxu0 0
    %474 = vmatpush1.bf16.msra.mxu0 %v450
    %475 = vmatprep.subr.bf16.mxu0 0
    %476 = vmatpush1.bf16.msra.mxu0 0
    %477 = vmatprep.subr.bf16.mxu0 0
    %478 = vmatpush1.bf16.msra.mxu0 0
    %479 = vmatprep.subr.bf16.mxu0 0
    %480 = vmatpush1.bf16.msra.mxu0 0
    %481 = vmatprep.subr.bf16.mxu0 0
    %482 = vmatpush1.bf16.msra.mxu0 0
    %483 = vmatprep.subr.bf16.mxu0 0
    %484 = vmatpush1.bf16.msra.mxu0 0
    %485 = vmatprep.subr.bf16.mxu0 0
    %486 = vmatpush1.bf16.msra.mxu0 0
    %487 = vmatprep.subr.bf16.mxu0 0
    %488 = vmatpush1.bf16.msra.mxu0 0
    %489 = vmatprep.subr.bf16.mxu0 0
    %490 = vmatpush1.bf16.msra.mxu0 0
    %491 = vmatprep.mubr.bf16.mxu0 0
    %492 = vmatmul.mubr.bf16.gmra.mrb[0].mxu0 %v380
    %v493 = vpop.f32.mrb[0].mxu0
    %v494 = vadd.f32 %v409, %v493
    %v495 = vpop.f32.mrb[0].mxu0
    %v496 = vpop.f32.mrb[0].mxu0
    %v497 = vadd.f32 %v409, %v496
    %v498 = vpop.f32.mrb[0].mxu0
    %499 = vmatprep.mubr.bf16.mxu0 0
    %500 = vmatmul.mubr.bf16.gmra.mrb[0].mxu0 %v381
    %v501 = vpop.f32.mrb[0].mxu0
    %v502 = vadd.f32 %v409, %v501
    %v503 = vpop.f32.mrb[0].mxu0
    %v504 = vpop.f32.mrb[0].mxu0
    %v505 = vadd.f32 %v409, %v504
    %v506 = vpop.f32.mrb[0].mxu0
    %507 = vmatprep.mubr.bf16.mxu0 0
    %508 = vmatmul.mubr.bf16.gmra.mrb[0].mxu0 %v382
    %v509 = vpop.f32.mrb[0].mxu0
    %v510 = vadd.f32 %v409, %v509
    %v511 = vpop.f32.mrb[0].mxu0
    %v512 = vpop.f32.mrb[0].mxu0
    %v513 = vadd.f32 %v409, %v512
    %v514 = vpop.f32.mrb[0].mxu0
    %515 = vmatprep.mubr.bf16.mxu0 0
    %516 = vmatmul.mubr.bf16.gmra.mrb[0].mxu0 %v383
    %v517 = vpop.f32.mrb[0].mxu0
    %v518 = vadd.f32 %v409, %v517
    %v519 = vpop.f32.mrb[0].mxu0
    %v520 = vpop.f32.mrb[0].mxu0
    %v521 = vadd.f32 %v409, %v520
    %v522 = vpop.f32.mrb[0].mxu0
    %523 = vmatprep.mubr.bf16.mxu0 0
    %524 = vmatmul.mubr.bf16.gmra.mrb[0].mxu0 %v384
    %v525 = vpop.f32.mrb[0].mxu0
    %v526 = vadd.f32 %v409, %v525
    %v527 = vpop.f32.mrb[0].mxu0
    %v528 = vpop.f32.mrb[0].mxu0
    %v529 = vadd.f32 %v409, %v528
    %v530 = vpop.f32.mrb[0].mxu0
    %531 = vmatprep.mubr.bf16.mxu0 0
    %532 = vmatmul.mubr.bf16.gmra.mrb[0].mxu0 %v385
    %v533 = vpop.f32.mrb[0].mxu0
    %v534 = vadd.f32 %v409, %v533
    %v535 = vpop.f32.mrb[0].mxu0
    %v536 = vpop.f32.mrb[0].mxu0
    %v537 = vadd.f32 %v409, %v536
    %v538 = vpop.f32.mrb[0].mxu0
    %539 = vmatprep.mubr.bf16.mxu0 0
    %540 = vmatmul.mubr.bf16.gmra.mrb[0].mxu0 %v386
    %v541 = vpop.f32.mrb[0].mxu0
    %v542 = vadd.f32 %v409, %v541
    %v543 = vpop.f32.mrb[0].mxu0
    %v544 = vpop.f32.mrb[0].mxu0
    %v545 = vadd.f32 %v409, %v544
    %v546 = vpop.f32.mrb[0].mxu0
    %547 = vmatprep.mubr.bf16.mxu0 0
    %548 = vmatmul.mubr.bf16.gmra.mrb[0].mxu0 %v387
    %v549 = vpop.f32.mrb[0].mxu0
    %v550 = vadd.f32 %v409, %v549
    %v551 = vpop.f32.mrb[0].mxu0
    %v552 = vpop.f32.mrb[0].mxu0
    %v553 = vadd.f32 %v409, %v552
    %v554 = vpop.f32.mrb[0].mxu0
    %555 = vdwg.mxu0
    %v556 = vmax.f32 %v494, 0.0
    %v557 = vmax.f32 %v497, 0.0
    %v558 = vmax.f32 %v502, 0.0
    %v559 = vmax.f32 %v505, 0.0
    %v560 = vmax.f32 %v510, 0.0
    %v561 = vmax.f32 %v513, 0.0
    %v562 = vmax.f32 %v518, 0.0
    %v563 = vmax.f32 %v521, 0.0
    %v564 = vmax.f32 %v526, 0.0
    %v565 = vmax.f32 %v529, 0.0
    %v566 = vmax.f32 %v534, 0.0
    %v567 = vmax.f32 %v537, 0.0
    %v568 = vmax.f32 %v542, 0.0
    %v569 = vmax.f32 %v545, 0.0
    %v570 = vmax.f32 %v550, 0.0
    %v571 = vmax.f32 %v553, 0.0
    %v572 = vpack.c.bf16 %v557, %v556
    %v573 = vpack.c.bf16 %v559, %v558
    %v574 = vpack.c.bf16 %v561, %v560
    %v575 = vpack.c.bf16 %v563, %v562
    %v576 = vpack.c.bf16 %v565, %v564
    %v577 = vpack.c.bf16 %v567, %v566
    %v578 = vpack.c.bf16 %v569, %v568
    %v579 = vpack.c.bf16 %v571, %v570
    %580 = vmatprep.subr.bf16.mxu0 0
    %581 = vmatpush1.bf16.msra.mxu0 %v572
    %582 = vmatprep.subr.bf16.mxu0 0
    %583 = vmatpush1.bf16.msra.mxu0 %v573
    %584 = vmatprep.subr.bf16.mxu0 0
    %585 = vmatpush1.bf16.msra.mxu0 %v574
    %586 = vmatprep.subr.bf16.mxu0 0
    %587 = vmatpush1.bf16.msra.mxu0 %v575
    %588 = vmatprep.subr.bf16.mxu0 0
    %589 = vmatpush1.bf16.msra.mxu0 %v576
    %590 = vmatprep.subr.bf16.mxu0 0
    %591 = vmatpush1.bf16.msra.mxu0 %v577
    %592 = vmatprep.subr.bf16.mxu0 0
    %593 = vmatpush1.bf16.msra.mxu0 %v578
    %594 = vmatprep.subr.bf16.mxu0 0
    %595 = vmatpush1.bf16.msra.mxu0 %v579
    %596 = vmatprep.subr.bf16.mxu0 0
    %597 = vmatpush1.bf16.msra.mxu0 0
    %598 = vmatprep.subr.bf16.mxu0 0
    %599 = vmatpush1.bf16.msra.mxu0 0
    %600 = vmatprep.subr.bf16.mxu0 0
    %601 = vmatpush1.bf16.msra.mxu0 0
    %602 = vmatprep.subr.bf16.mxu0 0
    %603 = vmatpush1.bf16.msra.mxu0 0
    %604 = vmatprep.subr.bf16.mxu0 0
    %605 = vmatpush1.bf16.msra.mxu0 0
    %606 = vmatprep.subr.bf16.mxu0 0
    %607 = vmatpush1.bf16.msra.mxu0 0
    %608 = vmatprep.subr.bf16.mxu0 0
    %609 = vmatpush1.bf16.msra.mxu0 0
    %610 = vmatprep.subr.bf16.mxu0 0
    %611 = vmatpush1.bf16.msra.mxu0 0
    %612 = vmatprep.mubr.bf16.mxu0 0
    %613 = vmatmul.mubr.bf16.gmra.mrb[0].mxu0 %v107
    %v614 = vpop.f32.mrb[0].mxu0
    %v615 = vadd.f32 %v556, %v614
    %v616 = vpop.f32.mrb[0].mxu0
    %v617 = vpop.f32.mrb[0].mxu0
    %v618 = vadd.f32 %v557, %v617
    %v619 = vpop.f32.mrb[0].mxu0
    %620 = vmatprep.mubr.bf16.mxu0 0
    %621 = vmatmul.mubr.bf16.gmra.mrb[0].mxu0 %v108
    %v622 = vpop.f32.mrb[0].mxu0
    %v623 = vadd.f32 %v558, %v622
    %v624 = vpop.f32.mrb[0].mxu0
    %v625 = vpop.f32.mrb[0].mxu0
    %v626 = vadd.f32 %v559, %v625
    %v627 = vpop.f32.mrb[0].mxu0
    %628 = vmatprep.mubr.bf16.mxu0 0
    %629 = vmatmul.mubr.bf16.gmra.mrb[0].mxu0 %v109
    %v630 = vpop.f32.mrb[0].mxu0
    %v631 = vadd.f32 %v560, %v630
    %v632 = vpop.f32.mrb[0].mxu0
    %v633 = vpop.f32.mrb[0].mxu0
    %v634 = vadd.f32 %v561, %v633
    %v635 = vpop.f32.mrb[0].mxu0
    %636 = vmatprep.mubr.bf16.mxu0 0
    %637 = vmatmul.mubr.bf16.gmra.mrb[0].mxu0 %v110
    %v638 = vpop.f32.mrb[0].mxu0
    %v639 = vadd.f32 %v562, %v638
    %v640 = vpop.f32.mrb[0].mxu0
    %v641 = vpop.f32.mrb[0].mxu0
    %v642 = vadd.f32 %v563, %v641
    %v643 = vpop.f32.mrb[0].mxu0
    %644 = vmatprep.mubr.bf16.mxu0 0
    %645 = vmatmul.mubr.bf16.gmra.mrb[0].mxu0 %v111
    %v646 = vpop.f32.mrb[0].mxu0
    %v647 = vadd.f32 %v564, %v646
    %v648 = vpop.f32.mrb[0].mxu0
    %v649 = vpop.f32.mrb[0].mxu0
    %v650 = vadd.f32 %v565, %v649
    %v651 = vpop.f32.mrb[0].mxu0
    %652 = vmatprep.mubr.bf16.mxu0 0
    %653 = vmatmul.mubr.bf16.gmra.mrb[0].mxu0 %v112
    %v654 = vpop.f32.mrb[0].mxu0
    %v655 = vadd.f32 %v566, %v654
    %v656 = vpop.f32.mrb[0].mxu0
    %v657 = vpop.f32.mrb[0].mxu0
    %v658 = vadd.f32 %v567, %v657
    %v659 = vpop.f32.mrb[0].mxu0
    %660 = vmatprep.mubr.bf16.mxu0 0
    %661 = vmatmul.mubr.bf16.gmra.mrb[0].mxu0 %v113
    %v662 = vpop.f32.mrb[0].mxu0
    %v663 = vadd.f32 %v568, %v662
    %v664 = vpop.f32.mrb[0].mxu0
    %v665 = vpop.f32.mrb[0].mxu0
    %v666 = vadd.f32 %v569, %v665
    %v667 = vpop.f32.mrb[0].mxu0
    %668 = vmatprep.mubr.bf16.mxu0 0
    %669 = vmatmul.mubr.bf16.gmra.mrb[0].mxu0 %v114
    %v670 = vpop.f32.mrb[0].mxu0
    %v671 = vadd.f32 %v570, %v670
    %v672 = vpop.f32.mrb[0].mxu0
    %v673 = vpop.f32.mrb[0].mxu0
    %v674 = vadd.f32 %v571, %v673
    %v675 = vpop.f32.mrb[0].mxu0
    %676 = vdwg.mxu0
    %v677 = vmul.f32 %v615, %v287
    %v678 = vmul.f32 %v618, %v292
    %v679 = vmul.f32 %v623, %v297
    %v680 = vmul.f32 %v626, %v302
    %v681 = vmul.f32 %v631, %v307
    %v682 = vmul.f32 %v634, %v312
    %v683 = vmul.f32 %v639, %v317
    %v684 = vmul.f32 %v642, %v322
    %v685 = vmul.f32 %v647, %v327
    %v686 = vmul.f32 %v650, %v332
    %v687 = vmul.f32 %v655, %v337
    %v688 = vmul.f32 %v658, %v342
    %v689 = vmul.f32 %v663, %v347
    %v690 = vmul.f32 %v666, %v352
    %v691 = vmul.f32 %v671, %v357
    %v692 = vmul.f32 %v674, %v362
    %v693 = vpack.c.bf16 %v678, %v677
    %v694 = vpack.c.bf16 %v680, %v679
    %v695 = vpack.c.bf16 %v682, %v681
    %v696 = vpack.c.bf16 %v684, %v683
    %v697 = vpack.c.bf16 %v686, %v685
    %v698 = vpack.c.bf16 %v688, %v687
    %v699 = vpack.c.bf16 %v690, %v689
    %v700 = vpack.c.bf16 %v692, %v691
    %v701 = vld [vmem:[#allocation10] sm:$0xf]
    %v702 = vld [vmem:[#allocation10 + $0x4] sm:$0xf]
    %v703 = vld [vmem:[#allocation10 + $0x8] sm:$0xf]
    %v704 = vld [vmem:[#allocation10 + $0xc] sm:$0xf]
    %v705 = vld [vmem:[#allocation10 + $0x10] sm:$0xf]
    %v706 = vld [vmem:[#allocation10 + $0x14] sm:$0xf]
    %v707 = vld [vmem:[#allocation10 + $0x18] sm:$0xf]
    %v708 = vld [vmem:[#allocation10 + $0x1c] sm:$0xf]
    %v709 = vld [vmem:[#allocation10 + $0x20] sm:$0xf]
    %v710 = vld [vmem:[#allocation10 + $0x24] sm:$0xf]
    %v711 = vld [vmem:[#allocation10 + $0x28] sm:$0xf]
    %v712 = vld [vmem:[#allocation10 + $0x2c] sm:$0xf]
    %v713 = vld [vmem:[#allocation10 + $0x30] sm:$0xf]
    %v714 = vld [vmem:[#allocation10 + $0x34] sm:$0xf]
    %v715 = vld [vmem:[#allocation10 + $0x38] sm:$0xf]
    %v716 = vld [vmem:[#allocation10 + $0x3c] sm:$0xf]
    %v717 = vld [vmem:[#allocation11] sm:$0x1]
    %v719 = vlaneseq
    %v720 = vshrl.u32 %v719, 7
    %v721 = vsub.s32 0, %v720
    %v722 = vrot.slane %v717, %v721
    %v740 = vunpack.c.l.b16 %v701
    %v741 = vunpack.c.l.b16 %v702
    %v742 = vunpack.c.l.b16 %v703
    %v743 = vunpack.c.l.b16 %v704
    %v744 = vunpack.c.l.b16 %v705
    %v745 = vunpack.c.l.b16 %v706
    %v746 = vunpack.c.l.b16 %v707
    %v747 = vunpack.c.l.b16 %v708
    %v748 = vunpack.c.l.b16 %v709
    %v749 = vunpack.c.l.b16 %v710
    %v750 = vunpack.c.l.b16 %v711
    %v751 = vunpack.c.l.b16 %v712
    %v752 = vunpack.c.l.b16 %v713
    %v753 = vunpack.c.l.b16 %v714
    %v754 = vunpack.c.l.b16 %v715
    %v755 = vunpack.c.l.b16 %v716
    %v756 = vpack.c.b16 %v741, %v740
    %v757 = vpack.c.b16 %v743, %v742
    %v758 = vpack.c.b16 %v745, %v744
    %v759 = vpack.c.b16 %v747, %v746
    %v760 = vpack.c.b16 %v749, %v748
    %v761 = vpack.c.b16 %v751, %v750
    %v762 = vpack.c.b16 %v753, %v752
    %v763 = vpack.c.b16 %v755, %v754
    %772 = vmatprep.subr.bf16.mxu0 0
    %773 = vmatpush1.bf16.msra.mxu0 %v756
    %774 = vmatprep.subr.bf16.mxu0 0
    %775 = vmatpush1.bf16.msra.mxu0 %v757
    %776 = vmatprep.subr.bf16.mxu0 0
    %777 = vmatpush1.bf16.msra.mxu0 %v758
    %778 = vmatprep.subr.bf16.mxu0 0
    %779 = vmatpush1.bf16.msra.mxu0 %v759
    %780 = vmatprep.subr.bf16.mxu0 0
    %781 = vmatpush1.bf16.msra.mxu0 %v760
    %782 = vmatprep.subr.bf16.mxu0 0
    %783 = vmatpush1.bf16.msra.mxu0 %v761
    %784 = vmatprep.subr.bf16.mxu0 0
    %785 = vmatpush1.bf16.msra.mxu0 %v762
    %786 = vmatprep.subr.bf16.mxu0 0
    %787 = vmatpush1.bf16.msra.mxu0 %v763
    %788 = vmatprep.subr.bf16.mxu0 0
    %789 = vmatpush1.bf16.msra.mxu0 0
    %790 = vmatprep.subr.bf16.mxu0 0
    %791 = vmatpush1.bf16.msra.mxu0 0
    %792 = vmatprep.subr.bf16.mxu0 0
    %793 = vmatpush1.bf16.msra.mxu0 0
    %794 = vmatprep.subr.bf16.mxu0 0
    %795 = vmatpush1.bf16.msra.mxu0 0
    %796 = vmatprep.subr.bf16.mxu0 0
    %797 = vmatpush1.bf16.msra.mxu0 0
    %798 = vmatprep.subr.bf16.mxu0 0
    %799 = vmatpush1.bf16.msra.mxu0 0
    %800 = vmatprep.subr.bf16.mxu0 0
    %801 = vmatpush1.bf16.msra.mxu0 0
    %802 = vmatprep.subr.bf16.mxu0 0
    %803 = vmatpush1.bf16.msra.mxu0 0
    %804 = vmatprep.mubr.bf16.mxu0 0
    %805 = vmatmul.mubr.bf16.gmra.mrb[0].mxu0 %v693
    %v806 = vpop.f32.mrb[0].mxu0
    %v807 = vadd.f32 %v722, %v806
    %v808 = vpop.f32.mrb[0].mxu0
    %v809 = vpop.f32.mrb[0].mxu0
    %v810 = vadd.f32 %v722, %v809
    %v811 = vpop.f32.mrb[0].mxu0
    %812 = vmatprep.mubr.bf16.mxu0 0
    %813 = vmatmul.mubr.bf16.gmra.mrb[0].mxu0 %v694
    %v814 = vpop.f32.mrb[0].mxu0
    %v815 = vadd.f32 %v722, %v814
    %v816 = vpop.f32.mrb[0].mxu0
    %v817 = vpop.f32.mrb[0].mxu0
    %v818 = vadd.f32 %v722, %v817
    %v819 = vpop.f32.mrb[0].mxu0
    %820 = vmatprep.mubr.bf16.mxu0 0
    %821 = vmatmul.mubr.bf16.gmra.mrb[0].mxu0 %v695
    %v822 = vpop.f32.mrb[0].mxu0
    %v823 = vadd.f32 %v722, %v822
    %v824 = vpop.f32.mrb[0].mxu0
    %v825 = vpop.f32.mrb[0].mxu0
    %v826 = vadd.f32 %v722, %v825
    %v827 = vpop.f32.mrb[0].mxu0
    %828 = vmatprep.mubr.bf16.mxu0 0
    %829 = vmatmul.mubr.bf16.gmra.mrb[0].mxu0 %v696
    %v830 = vpop.f32.mrb[0].mxu0
    %v831 = vadd.f32 %v722, %v830
    %v832 = vpop.f32.mrb[0].mxu0
    %v833 = vpop.f32.mrb[0].mxu0
    %v834 = vadd.f32 %v722, %v833
    %v835 = vpop.f32.mrb[0].mxu0
    %836 = vmatprep.mubr.bf16.mxu0 0
    %837 = vmatmul.mubr.bf16.gmra.mrb[0].mxu0 %v697
    %v838 = vpop.f32.mrb[0].mxu0
    %v839 = vadd.f32 %v722, %v838
    %v840 = vpop.f32.mrb[0].mxu0
    %v841 = vpop.f32.mrb[0].mxu0
    %v842 = vadd.f32 %v722, %v841
    %v843 = vpop.f32.mrb[0].mxu0
    %844 = vmatprep.mubr.bf16.mxu0 0
    %845 = vmatmul.mubr.bf16.gmra.mrb[0].mxu0 %v698
    %v846 = vpop.f32.mrb[0].mxu0
    %v847 = vadd.f32 %v722, %v846
    %v848 = vpop.f32.mrb[0].mxu0
    %v849 = vpop.f32.mrb[0].mxu0
    %v850 = vadd.f32 %v722, %v849
    %v851 = vpop.f32.mrb[0].mxu0
    %852 = vmatprep.mubr.bf16.mxu0 0
    %853 = vmatmul.mubr.bf16.gmra.mrb[0].mxu0 %v699
    %v854 = vpop.f32.mrb[0].mxu0
    %v855 = vadd.f32 %v722, %v854
    %v856 = vpop.f32.mrb[0].mxu0
    %v857 = vpop.f32.mrb[0].mxu0
    %v858 = vadd.f32 %v722, %v857
    %v859 = vpop.f32.mrb[0].mxu0
    %860 = vmatprep.mubr.bf16.mxu0 0
    %861 = vmatmul.mubr.bf16.gmra.mrb[0].mxu0 %v700
    %v862 = vpop.f32.mrb[0].mxu0
    %v863 = vadd.f32 %v722, %v862
    %v864 = vpop.f32.mrb[0].mxu0
    %v865 = vpop.f32.mrb[0].mxu0
    %v866 = vadd.f32 %v722, %v865
    %v867 = vpop.f32.mrb[0].mxu0
    %868 = vdwg.mxu0
    %869 = vst [vmem:[#allocation13] sm:$0xff] %v807
    %870 = vst [vmem:[#allocation13 + $0x8] sm:$0xff] %v810
    %871 = vst [vmem:[#allocation13 + $0x10] sm:$0xff] %v815
    %872 = vst [vmem:[#allocation13 + $0x18] sm:$0xff] %v818
    %873 = vst [vmem:[#allocation13 + $0x20] sm:$0xff] %v823
    %874 = vst [vmem:[#allocation13 + $0x28] sm:$0xff] %v826
    %875 = vst [vmem:[#allocation13 + $0x30] sm:$0xff] %v831
    %876 = vst [vmem:[#allocation13 + $0x38] sm:$0xff] %v834
    %877 = vst [vmem:[#allocation13 + $0x40] sm:$0xff] %v839
    %878 = vst [vmem:[#allocation13 + $0x48] sm:$0xff] %v842
    %879 = vst [vmem:[#allocation13 + $0x50] sm:$0xff] %v847
    %880 = vst [vmem:[#allocation13 + $0x58] sm:$0xff] %v850
    %881 = vst [vmem:[#allocation13 + $0x60] sm:$0xff] %v855
    %882 = vst [vmem:[#allocation13 + $0x68] sm:$0xff] %v858
    %883 = vst [vmem:[#allocation13 + $0x70] sm:$0xff] %v863
    %884 = vst [vmem:[#allocation13 + $0x78] sm:$0xff] %v866
    // Predicated region
    $region50: #{sage_forward.1} parent=1 // pred_check
      _
    $region51: #{sage_forward.1} parent=1 // pred_check_branch
      %886 = sbr.rel (0) target = $region53
    $region52: #{sage_forward.1} parent=1 // pred_region
      %s888 = ssub.s32 2048, 2048
      %889 = vsyncadd [#allocation4], %s888
      %s890 = sshll.u32 [#allocation13], 4
      %s891 = int_to_ptr.vmem [resolvable:$true] %s890
      %896 = dma.vmem_to_hbm [thread:$0]  %s891, 2048, %s6, [#allocation4], 128, 128, 8
    $region53: #{sage_forward.1} parent=1 // pred_fallthru
      _
    // Predicated region
    $region54: #{sage_forward.1} parent=1 // pred_check
      _
    $region55: #{sage_forward.1} parent=1 // pred_check_branch
      %898 = sbr.rel (0) target = $region57
    $region56: #{sage_forward.1} parent=1 // pred_region
      %899 = dma.done [#allocation4], 2048
    $region57: #{sage_forward.1} parent=1 // pred_fallthru
      _
    %900 = vsyncpa [#allocation3], 1
    %901 = vsyncpa [#allocation6], 1
    %902 = vsyncpa [#allocation9], 1
    %903 = vsyncpa [#allocation12], 1
    %904 = vsyncpa [#allocation4], 1

</llo_original>
